<compile_context>
chip_gen: v6e
topology: v6e:2x2x1
jax: 0.10.0
libtpu: 0.0.40
codegen_flags: <defaults>
</compile_context>

<pallas_src>
import jax
import jax.numpy as jnp
from jax.experimental import pallas as pl
from jax.experimental.pallas import tpu as pltpu

LANES = 128               # lane tile (last dim)
STRIP_ROWS = 512          # in-kernel accumulation strip: 512x128 f32 = 256 KiB
MAX_STRIPS_PER_BLOCK = 4  # DMA block of up to 2048 rows = 1 MiB f32 per input


def _sublane_pack(dtype) -> int:
    """Sublane packing multiple for a dtype (8 f32 / 16 bf16 / 32 int8-fp8)."""
    return max(8, 32 // jnp.dtype(dtype).itemsize)


def _make_bpr_kernel(*, n_valid, block_rows, strip_rows, strips_per_block,
                     need_mask):
    """Builds the kernel: per-block partial sums of log(1 + exp(-(pos - neg)))."""

    def kernel(pos_ref, neg_ref, out_ref):
        block_row0 = pl.program_id(0) * block_rows  # global row of block start

        def strip_body(s, acc):
            r0 = pl.multiple_of(s * strip_rows, strip_rows)
            d = (pos_ref[pl.ds(r0, strip_rows), :].astype(jnp.float32)
                 - neg_ref[pl.ds(r0, strip_rows), :].astype(jnp.float32))
            # Numerically stable softplus(-d) == log(1 + exp(-d)):
            #   max(-d, 0) + log(1 + exp(-|d|));  exp(-|d|) <= 1, no overflow.
            loss = jnp.maximum(-d, 0.0) + jnp.log(1.0 + jnp.exp(-jnp.abs(d)))
            if need_mask:
                # Mask out-of-range elements (ragged last block / lane-pad
                # tail).  Select-based masking is robust to whatever garbage
                # the out-of-bounds region of the block contains (even NaN/Inf)
                # and the int VPU work hides under the DMA shadow.
                row = jax.lax.broadcasted_iota(jnp.int32, (strip_rows, LANES), 0)
                lane = jax.lax.broadcasted_iota(jnp.int32, (strip_rows, LANES), 1)
                flat = (block_row0 + r0 + row) * LANES + lane
                loss = jnp.where(flat < n_valid, loss, 0.0)
            # Fold the strip into an (8,128) vreg with pure VPU adds (the
            # reshape only regroups whole (8,128) tiles -> layout-preserving).
            return acc + jnp.sum(loss.reshape(strip_rows // 8, 8, LANES), axis=0)

        acc = jax.lax.fori_loop(0, strips_per_block, strip_body,
                                jnp.zeros((8, LANES), jnp.float32), unroll=True)
        out_ref[...] = acc

    return kernel


def bpr_loss(pos_preds: jax.Array, neg_preds: jax.Array) -> jax.Array:
    """sum(log(1 + exp(-(pos_preds - neg_preds)))) via a Pallas TPU kernel."""
    assert pos_preds.shape == neg_preds.shape
    n = pos_preds.size
    if n == 0:
        return jnp.zeros((), jnp.float32)
    assert n < 2 ** 31, "int32 flat-index masking limit"

    pos_flat = pos_preds.reshape(-1)
    neg_flat = neg_preds.reshape(-1)

    # Only pad when n is not lane-aligned, and only by <128 elements; the
    # padded elements are excluded by the in-kernel mask so the pad value (0)
    # is irrelevant.  When n % 128 == 0 (common case) nothing is copied.
    if n % LANES:
        tail = LANES - n % LANES
        pos_flat = jnp.pad(pos_flat, (0, tail))
        neg_flat = jnp.pad(neg_flat, (0, tail))
    rows = pos_flat.size // LANES  # == cdiv(n, 128)

    pack = max(_sublane_pack(pos_flat.dtype), _sublane_pack(neg_flat.dtype))

    if rows <= STRIP_ROWS:
        # Small input: a single block / single strip, rounded up to the
        # dtype's sublane packing (the partial-block tail rows are masked).
        strip_rows = pl.cdiv(rows, pack) * pack
        strips_per_block = 1
    else:
        strip_rows = STRIP_ROWS
        total_strips = pl.cdiv(rows, STRIP_ROWS)
        # >= 2 blocks so v7x can shard across both TensorCores; up to
        # MAX_STRIPS_PER_BLOCK strips per block; prefer an even block count
        # (search down to half-sized blocks before giving up).
        strips_per_block = min(MAX_STRIPS_PER_BLOCK, total_strips // 2)
        for cand in range(strips_per_block, max(strips_per_block // 2, 1) - 1, -1):
            if pl.cdiv(total_strips, cand) % 2 == 0:
                strips_per_block = cand
                break
    block_rows = strip_rows * strips_per_block
    num_blocks = pl.cdiv(rows, block_rows)
    need_mask = num_blocks * block_rows * LANES > n

    # Free bitcast: pos_flat/neg_flat are already lane-aligned here.
    pos2d = pos_flat.reshape(rows, LANES)
    neg2d = neg_flat.reshape(rows, LANES)

    kernel = _make_bpr_kernel(
        n_valid=n, block_rows=block_rows, strip_rows=strip_rows,
        strips_per_block=strips_per_block, need_mask=need_mask)

    partials = pl.pallas_call(
        kernel,
        out_shape=jax.ShapeDtypeStruct((num_blocks * 8, LANES), jnp.float32),
        grid_spec=pltpu.PrefetchScalarGridSpec(
            num_scalar_prefetch=0,
            grid=(num_blocks,),
            in_specs=[
                pl.BlockSpec((block_rows, LANES), lambda i: (i, 0)),
                pl.BlockSpec((block_rows, LANES), lambda i: (i, 0)),
            ],
            out_specs=pl.BlockSpec((8, LANES), lambda i: (i, 0)),
        ),
        compiler_params=pltpu.CompilerParams(
            # Independent per-block partials -> v7x shards the grid across its
            # two TensorCores; harmless on single-TC v5e/v6e.
            dimension_semantics=("parallel",),
        ),
    )(pos2d, neg2d)

    # Final (tiny) reduction of the per-block vreg partials.
    return jnp.sum(partials)


def bpr_loss_ref(pos_preds, neg_preds):
    d = pos_preds.astype(jnp.float32) - neg_preds.astype(jnp.float32)
    return jnp.sum(jnp.log(1.0 + jnp.exp(-d)))


if __name__ == "__main__":
    key = jax.random.PRNGKey(0)
    k1, k2 = jax.random.split(key)

    # A small batch of preference scores (one per (user, pos-item, neg-item)
    # triple).  N = 21*128: lane-aligned (zero-copy path) but not a multiple of
    # 8 rows, so the in-kernel tail mask / partial-block path is exercised.
    N = 2688
    pos_preds = jax.random.normal(k1, (N,), dtype=jnp.float32)
    neg_preds = jax.random.normal(k2, (N,), dtype=jnp.float32)

    loss = bpr_loss(pos_preds, neg_preds)
    jax.block_until_ready(loss)
    ref = bpr_loss_ref(pos_preds, neg_preds)
    assert jnp.allclose(loss, ref, rtol=1e-4, atol=1e-2), (loss, ref)

    # Secondary check: non-lane-aligned N with multiple parallel blocks
    # (exercises the <128-element pad, the multi-block grid and masking).
    N2 = 70_000
    k3, k4 = jax.random.split(k2)
    pos2 = jax.random.normal(k3, (N2,), dtype=jnp.float32)
    neg2 = jax.random.normal(k4, (N2,), dtype=jnp.float32)
    loss2 = bpr_loss(pos2, neg2)
    jax.block_until_ready(loss2)
    ref2 = bpr_loss_ref(pos2, neg2)
    assert jnp.allclose(loss2, ref2, rtol=1e-4, atol=1e-2), (loss2, ref2)

    print("KERNEL_OK")
</pallas_src>

<mosaic_0001>
module attributes {stable_mosaic.version = 11 : i64} {
  func.func @kernel(%arg0: i32, %arg1: memref<24x128xf32, #tpu.memory_space<vmem>>, %arg2: memref<24x128xf32, #tpu.memory_space<vmem>>, %arg3: memref<8x128xf32, #tpu.memory_space<vmem>>) attributes {dimension_semantics = [#tpu.dimension_semantics<parallel>], iteration_bounds = array<i64: 1>, scalar_prefetch = 0 : i64, scratch_operands = 0 : i64, tpu.core_type = #tpu.core_type<tc>, window_params = [{transform_indices = @transform_0, window_bounds = array<i64: 24, 128>}, {transform_indices = @transform_1, window_bounds = array<i64: 24, 128>}, {transform_indices = @transform_2, window_bounds = array<i64: 8, 128>}]} {
    %c24_i32 = arith.constant 24 : i32
    %0 = arith.muli %arg0, %c24_i32 : i32
    %cst = arith.constant 0.000000e+00 : f32
    %1 = vector.broadcast %cst : f32 to vector<8x128xf32>
    %c0_i32 = arith.constant 0 : i32
    %c24_i32_0 = arith.constant 24 : i32
    %2 = arith.muli %c0_i32, %c24_i32_0 : i32
    %3 = tpu.assume_multiple %2, 24 : i32
    %4 = arith.index_cast %3 : i32 to index
    %c0 = arith.constant 0 : index
    %5 = vector.load %arg1[%4, %c0] : memref<24x128xf32, #tpu.memory_space<vmem>>, vector<24x128xf32>
    %6 = arith.index_cast %3 : i32 to index
    %c0_1 = arith.constant 0 : index
    %7 = vector.load %arg2[%6, %c0_1] : memref<24x128xf32, #tpu.memory_space<vmem>>, vector<24x128xf32>
    %8 = arith.subf %5, %7 : vector<24x128xf32>
    %cst_2 = arith.constant 0.000000e+00 : f32
    %9 = vector.broadcast %cst_2 : f32 to vector<24x128xf32>
    %10 = arith.subf %9, %8 : vector<24x128xf32>
    %cst_3 = arith.constant 0.000000e+00 : f32
    %11 = vector.broadcast %cst_3 : f32 to vector<24x128xf32>
    %12 = arith.maximumf %10, %11 : vector<24x128xf32>
    %13 = math.absf %8 : vector<24x128xf32>
    %cst_4 = arith.constant 0.000000e+00 : f32
    %14 = vector.broadcast %cst_4 : f32 to vector<24x128xf32>
    %15 = arith.subf %14, %13 : vector<24x128xf32>
    %16 = math.exp %15 : vector<24x128xf32>
    %cst_5 = arith.constant 1.000000e+00 : f32
    %17 = vector.broadcast %cst_5 : f32 to vector<24x128xf32>
    %18 = arith.addf %17, %16 : vector<24x128xf32>
    %19 = math.log %18 : vector<24x128xf32>
    %20 = arith.addf %12, %19 : vector<24x128xf32>
    %21 = tpu.iota {dimensions = array<i32: 0>} : vector<24x128xi32>
    %22 = tpu.iota {dimensions = array<i32: 1>} : vector<24x128xi32>
    %23 = arith.addi %0, %3 : i32
    %24 = vector.broadcast %23 : i32 to vector<24x128xi32>
    %25 = arith.addi %24, %21 : vector<24x128xi32>
    %c128_i32 = arith.constant 128 : i32
    %26 = vector.broadcast %c128_i32 : i32 to vector<24x128xi32>
    %27 = arith.muli %25, %26 : vector<24x128xi32>
    %28 = arith.addi %27, %22 : vector<24x128xi32>
    %c2688_i32 = arith.constant 2688 : i32
    %29 = vector.broadcast %c2688_i32 : i32 to vector<24x128xi32>
    %30 = arith.cmpi slt, %28, %29 : vector<24x128xi32>
    %cst_6 = arith.constant 0.000000e+00 : f32
    %31 = vector.broadcast %cst_6 : f32 to vector<24x128xf32>
    %32 = arith.select %30, %20, %31 : vector<24x128xi1>, vector<24x128xf32>
    %33 = vector.shape_cast %32 : vector<24x128xf32> to vector<3x8x128xf32>
    %cst_7 = arith.constant dense<0.000000e+00> : vector<8x128xf32>
    %34 = vector.multi_reduction <add>, %33, %cst_7 [0] : vector<3x8x128xf32> to vector<8x128xf32>
    %35 = arith.addf %1, %34 : vector<8x128xf32>
    %c1_i32 = arith.constant 1 : i32
    %c0_8 = arith.constant 0 : index
    %c0_9 = arith.constant 0 : index
    %36 = vector.load %arg3[%c0_8, %c0_9] : memref<8x128xf32, #tpu.memory_space<vmem>>, vector<8x128xf32>
    tpu.vector_store %arg3[%c0_8, %c0_9], %35 {strides = array<i32>} : memref<8x128xf32, #tpu.memory_space<vmem>>, vector<8x128xf32>,
    return
  }
  func.func @transform_0(%arg0: i32) -> (i32, i32) {
    %c0_i32 = arith.constant 0 : i32
    %c0_i32_0 = arith.constant 0 : i32
    return %arg0, %c0_i32 : i32, i32
  }
  func.func @transform_1(%arg0: i32) -> (i32, i32) {
    %c0_i32 = arith.constant 0 : i32
    %c0_i32_0 = arith.constant 0 : i32
    return %arg0, %c0_i32 : i32, i32
  }
  func.func @transform_2(%arg0: i32) -> (i32, i32) {
    %c0_i32 = arith.constant 0 : i32
    %c0_i32_0 = arith.constant 0 : i32
    return %arg0, %c0_i32 : i32, i32
  }
}

</mosaic_0001>

<llo_original>
// kernel: tpu_custom_call.1
$region0: #{tpu_custom_call.1}
  #allocation0 [shape = 'u32[]', space=smem, size = 0x4, offset = 0x4, fixed_abs, tag = 'smem constant byte address 0x4 - core index']
  #allocation1 [shape = 'u32[144,128]{1,0:T(1,128)}', space=vmem, size = 0x12000, scoped, tag = 'internal scratch']
  %s0 = inlined_call_operand.hbm [shape: f32[21,128], index: 0, kind: input, shape index: {}]
  %s1 = inlined_call_operand.hbm [shape: f32[21,128], index: 1, kind: input, shape index: {}]
  %s2 = inlined_call_operand.hbm [shape: f32[8,128], index: 2, kind: output, shape index: {}]
  %s3 = sld [smem:[#allocation0]]
  $region26: #{tpu_custom_call.1} parent=0
    _
  %s5 = ssub.s32 1, %s3
  %s6 = scalar_select 0, %s5, %s3
  $region1: #{tpu_custom_call.1} parent=0
    #allocation2 [shape = 'u8[12288]{0}', space=vmem, size = 0x3000, scoped, tag = 'input window, operand 0, single buffered']
    #allocation3 [shape = 's32[1]{0}', space=sflag, size = 0x4, scoped, tag = 'scoped memory for tpu_custom_call.1']
    #allocation4 [shape = 's32[1]{0}', space=sflag, size = 0x4, scoped, tag = 'scoped memory for tpu_custom_call.1']
    #allocation5 [shape = 'u8[12288]{0}', space=vmem, size = 0x3000, scoped, tag = 'input window, operand 1, single buffered']
    #allocation6 [shape = 's32[1]{0}', space=sflag, size = 0x4, scoped, tag = 'scoped memory for tpu_custom_call.1']
    #allocation7 [shape = 'u8[4096]{0}', space=vmem, size = 0x1000, scoped, tag = 'output window, operand 0, single buffered']
    %7 = vsyncpa [#allocation3], 0
    %8 = vsyncpa [#allocation6], 0
    %9 = vsyncpa [#allocation4], 0
    // Predicated region
    $region2: #{tpu_custom_call.1} parent=1 // pred_check
      _
    $region3: #{tpu_custom_call.1} parent=1 // pred_check_branch
      %11 = sbr.rel (0) target = $region5
    $region4: #{tpu_custom_call.1} parent=1 // pred_region
      %s13 = ssub.s32 384, 384
      %14 = vsyncadd [#allocation3], %s13
      %s15 = sshll.u32 [#allocation2], 4
      %s16 = int_to_ptr.vmem [resolvable:$true] %s15
      %21 = dma.hbm_to_vmem [thread:$0]  %s0, 384, %s16, [#allocation3], 128, 128, 8
    $region5: #{tpu_custom_call.1} parent=1 // pred_fallthru
      _
    // Predicated region
    $region6: #{tpu_custom_call.1} parent=1 // pred_check
      _
    $region7: #{tpu_custom_call.1} parent=1 // pred_check_branch
      %23 = sbr.rel (0) target = $region9
    $region8: #{tpu_custom_call.1} parent=1 // pred_region
      %s25 = ssub.s32 384, 384
      %26 = vsyncadd [#allocation6], %s25
      %s27 = sshll.u32 [#allocation5], 4
      %s28 = int_to_ptr.vmem [resolvable:$true] %s27
      %33 = dma.hbm_to_vmem [thread:$0]  %s1, 384, %s28, [#allocation6], 128, 128, 8
    $region9: #{tpu_custom_call.1} parent=1 // pred_fallthru
      _
    // Predicated region
    $region10: #{tpu_custom_call.1} parent=1 // pred_check
      _
    $region11: #{tpu_custom_call.1} parent=1 // pred_check_branch
      %35 = sbr.rel (0) target = $region13
    $region12: #{tpu_custom_call.1} parent=1 // pred_region
      %36 = dma.done [#allocation3], 384
    $region13: #{tpu_custom_call.1} parent=1 // pred_fallthru
      _
    // Predicated region
    $region14: #{tpu_custom_call.1} parent=1 // pred_check
      _
    $region15: #{tpu_custom_call.1} parent=1 // pred_check_branch
      %38 = sbr.rel (0) target = $region17
    $region16: #{tpu_custom_call.1} parent=1 // pred_region
      %39 = dma.done [#allocation6], 384
    $region17: #{tpu_custom_call.1} parent=1 // pred_fallthru
      _
    %s40 = smul.u32 0, 24
    %v41 = vld [vmem:[#allocation2] sm:$0xff]
    %v42 = vld [vmem:[#allocation2 + $0x8] sm:$0xff]
    %v43 = vld [vmem:[#allocation2 + $0x10] sm:$0xff]
    %v44 = vld [vmem:[#allocation5] sm:$0xff]
    %v45 = vld [vmem:[#allocation5 + $0x8] sm:$0xff]
    %v46 = vld [vmem:[#allocation5 + $0x10] sm:$0xff]
    %v47 = vsub.f32 %v41, %v44
    %v48 = vsub.f32 %v42, %v45
    %v49 = vsub.f32 %v43, %v46
    %v50 = vsub.f32 0.0, %v47
    %v51 = vsub.f32 0.0, %v48
    %v52 = vsub.f32 0.0, %v49
    %v53 = vmax.f32 %v50, 0.0
    %v54 = vmax.f32 %v51, 0.0
    %v55 = vmax.f32 %v52, 0.0
    %v56 = vand.u32 2147483647, %v47
    %v57 = vand.u32 2147483647, %v48
    %v58 = vand.u32 2147483647, %v49
    %v59 = vsub.f32 0.0, %v56
    %v60 = vsub.f32 0.0, %v57
    %v61 = vsub.f32 0.0, %v58
    %v62 = vmul.f32 %v59, 1.442695
    %v63 = vpow.pop %v62
    %v64 = vmul.f32 %v60, 1.442695
    %v65 = vpow.pop %v64
    %v66 = vmul.f32 %v61, 1.442695
    %v67 = vpow.pop %v66
    %v68 = vadd.f32 %v63, 1.0
    %v69 = vadd.f32 %v65, 1.0
    %v70 = vadd.f32 %v67, 1.0
    %v71 = vlog2.pop %v68
    %v72 = vmul.f32 %v71, 0.6931472
    %v73 = vlog2.pop %v69
    %v74 = vmul.f32 %v73, 0.6931472
    %v75 = vlog2.pop %v70
    %v76 = vmul.f32 %v75, 0.6931472
    %v77 = vadd.f32 %v53, %v72
    %v78 = vadd.f32 %v54, %v74
    %v79 = vadd.f32 %v55, %v76
    %v80 = vlaneseq
    %v81 = vshrl.u32 %v80, 7
    %v82 = vadd.s32 %v81, 8
    %v83 = vadd.s32 %v81, 16
    %v84 = vlaneseq
    %v85 = vand.u32 %v84, 127
    %s86 = sadd.s32 %s40, 0
    %v87 = vstv %s86
    %v88 = vadd.s32 %v87, %v81
    %v89 = vadd.s32 %v87, %v82
    %v90 = vadd.s32 %v87, %v83
    %v91 = vmul.u32 %v88, 128
    %v92 = vmul.u32 %v89, 128
    %v93 = vmul.u32 %v90, 128
    %v94 = vadd.s32 %v91, %v85
    %v95 = vadd.s32 %v92, %v85
    %v96 = vadd.s32 %v93, %v85
    %vm97 = vcmp.lt.s32.totalorder %v94, 2688
    %vm98 = vcmp.lt.s32.totalorder %v95, 2688
    %vm99 = vcmp.lt.s32.totalorder %v96, 2688
    %v100 = vsel %vm97, %v77, 0.0
    %v101 = vsel %vm98, %v78, 0.0
    %v102 = vsel %vm99, %v79, 0.0
    %v103 = vadd.f32 %v100, %v101
    %v104 = vadd.f32 %v103, %v102
    %v105 = vadd.f32 %v104, 0.0
    %106 = vst [vmem:[#allocation7] sm:$0xff] %v105
    // Predicated region
    $region18: #{tpu_custom_call.1} parent=1 // pred_check
      _
    $region19: #{tpu_custom_call.1} parent=1 // pred_check_branch
      %108 = sbr.rel (0) target = $region21
    $region20: #{tpu_custom_call.1} parent=1 // pred_region
      %s110 = ssub.s32 128, 128
      %111 = vsyncadd [#allocation4], %s110
      %s113 = sshll.u32 [#allocation7], 4
      %s114 = int_to_ptr.vmem [resolvable:$true] %s113
      %116 = dma.vmem_to_hbm [thread:$0]  %s114, 128, %s2, [#allocation4]
    $region21: #{tpu_custom_call.1} parent=1 // pred_fallthru
      _
    // Predicated region
    $region22: #{tpu_custom_call.1} parent=1 // pred_check
      _
    $region23: #{tpu_custom_call.1} parent=1 // pred_check_branch
      %118 = sbr.rel (0) target = $region25
    $region24: #{tpu_custom_call.1} parent=1 // pred_region
      %119 = dma.done [#allocation4], 128
    $region25: #{tpu_custom_call.1} parent=1 // pred_fallthru
      _
    %120 = vsyncpa [#allocation3], 1
    %121 = vsyncpa [#allocation6], 1
    %122 = vsyncpa [#allocation4], 1

</llo_original>
